<compile_context>
chip_gen: v7x
topology: tpu7x:2x2x1
jax: 0.10.0
libtpu: 0.0.40
codegen_flags: <defaults>
</compile_context>

<pallas_src>
import jax
import jax.numpy as jnp
from jax.experimental import pallas as pl
from jax.experimental.pallas import tpu as pltpu

_LANE = 128  # f32 lane width of a vreg


def _round_up(x, m):
    return ((x + m - 1) // m) * m


def _pad_axis(a, target, axis):
    """Zero-pad `a` along `axis` up to length `target` (no-op if already there)."""
    cur = a.shape[axis]
    if cur >= target:
        return a
    widths = [(0, 0)] * a.ndim
    widths[axis] = (0, target - cur)
    return jnp.pad(a, widths)


def _policy_kernel(x_ref, w1_ref, b1_ref, w2_ref, b2_ref, w3_ref, b3_ref, o_ref):
    x = x_ref[...]

    # layer 1: Linear + ReLU (f32 accumulation on the MXU; bias/ReLU in f32)
    h1 = jnp.dot(x, w1_ref[...], preferred_element_type=jnp.float32) + b1_ref[...]
    h1 = jnp.maximum(h1, 0.0)

    # layer 2: Linear + ReLU
    h2 = (jnp.dot(h1.astype(w2_ref.dtype), w2_ref[...],
                  preferred_element_type=jnp.float32) + b2_ref[...])
    h2 = jnp.maximum(h2, 0.0)

    # layer 3: Linear + tanh (tanh on the EUP, f32); output stored at true width
    h3 = (jnp.dot(h2.astype(w3_ref.dtype), w3_ref[...],
                  preferred_element_type=jnp.float32) + b3_ref[...])
    o_ref[...] = jnp.tanh(h3).astype(o_ref.dtype)


def policy_forward(x, params, *, block_b=2048, use_bf16=False):
    """Run the Policy MLP forward pass as a single fused, batch-tiled Pallas kernel.

    x:      [B, n_input] float32
    params: dict with w1 [n_input,64], b1 [1,64], w2 [64,64], b2 [1,64],
            w3 [64,n_output], b3 [1,n_output]   (weights stored as [in, out])
    returns [B, n_output] float32
    """
    w1, b1 = params["w1"], params["b1"]
    w2, b2 = params["w2"], params["b2"]
    w3, b3 = params["w3"], params["b3"]

    B, n_input = x.shape
    hidden = w1.shape[1]
    n_output = w3.shape[1]

    # --- lane-dense padding of the hidden dim only (exact: zero padding) -----
    # n_input and n_output are left at their true sizes so HBM traffic for x and
    # the output is exactly the useful bytes.
    h_pad = int(_round_up(hidden, _LANE))

    w1p = _pad_axis(w1, h_pad, 1)
    b1p = _pad_axis(b1, h_pad, 1)
    w2p = _pad_axis(_pad_axis(w2, h_pad, 0), h_pad, 1)
    b2p = _pad_axis(b2, h_pad, 1)
    w3p = _pad_axis(w3, h_pad, 0)          # [h_pad, n_output]
    b3p = b3                                # [1, n_output]

    if use_bf16:
        # Halve x/weight read traffic on v6e/v7x; accumulation, biases and all
        # elementwise work (ReLU/tanh) stay f32 (v5e-safe).
        x = x.astype(jnp.bfloat16)
        w1p = w1p.astype(jnp.bfloat16)
        w2p = w2p.astype(jnp.bfloat16)
        w3p = w3p.astype(jnp.bfloat16)

    # --- batch tiling: no wrapper padding; ragged tail handled in-kernel -----
    sub = 16 if use_bf16 else 8            # sublane packing multiple
    tb = int(min(block_b, _round_up(B, sub)))
    # Keep >= 2 grid steps when the batch allows it so both v7x TensorCores get
    # work (harmless on v5e/v6e).
    if pl.cdiv(B, tb) < 2 and B > sub:
        tb = int(_round_up(pl.cdiv(B, 2), sub))
    grid = (pl.cdiv(B, tb),)

    in_bytes = x.dtype.itemsize
    out_dtype = jnp.float32
    weight_bytes = sum(a.size * a.dtype.itemsize
                       for a in (w1p, b1p, w2p, b2p, w3p, b3p))

    # VMEM footprint: double-buffered x/out tiles + (effectively single-copy)
    # resident weights; add generous headroom and stay under v7x's 64 MiB.
    est = 2 * (tb * n_input * in_bytes + tb * n_output * 4) + 2 * weight_bytes
    vmem_limit = int(min(max(32 << 20, 3 * est), 64 << 20))

    out = pl.pallas_call(
        _policy_kernel,
        out_shape=jax.ShapeDtypeStruct((B, n_output), out_dtype),
        grid=grid,
        in_specs=[
            # x: tiled along the batch axis (double-buffered by the pipeline);
            # last tile may run past B -- OOB rows only feed discarded output rows.
            pl.BlockSpec((tb, n_input), lambda i: (i, 0)),
            # weights / biases: constant block index -> fetched once, VMEM-resident
            pl.BlockSpec(w1p.shape, lambda i: (0, 0)),
            pl.BlockSpec(b1p.shape, lambda i: (0, 0)),
            pl.BlockSpec(w2p.shape, lambda i: (0, 0)),
            pl.BlockSpec(b2p.shape, lambda i: (0, 0)),
            pl.BlockSpec(w3p.shape, lambda i: (0, 0)),
            pl.BlockSpec(b3p.shape, lambda i: (0, 0)),
        ],
        # Output at its true width: no lane padding, no post-slice; OOB rows of
        # the last block are masked on writeback.
        out_specs=pl.BlockSpec((tb, n_output), lambda i: (i, 0)),
        compiler_params=pltpu.CompilerParams(
            dimension_semantics=("parallel",),   # batch axis shards across TCs on v7x
            vmem_limit_bytes=vmem_limit,
        ),
        cost_estimate=pl.CostEstimate(
            flops=2 * B * (n_input * h_pad + h_pad * h_pad + h_pad * n_output),
            transcendentals=B * n_output,
            bytes_accessed=(B * n_input * in_bytes      # read x
                            + B * n_output * 4          # write out
                            + weight_bytes),            # read weights once
        ),
    )(x, w1p, b1p, w2p, b2p, w3p, b3p)

    return out


def init_policy_params(key, n_input, n_output, hidden=64):
    """Deterministic init mirroring torch.nn.Linear's default
    (uniform(-1/sqrt(fan_in), 1/sqrt(fan_in)) for both weight and bias)."""
    ks = jax.random.split(key, 6)

    def linear(kw, kb, fan_in, fan_out):
        bound = 1.0 / jnp.sqrt(jnp.float32(fan_in))
        w = jax.random.uniform(kw, (fan_in, fan_out), jnp.float32, -bound, bound)
        b = jax.random.uniform(kb, (1, fan_out), jnp.float32, -bound, bound)
        return w, b

    w1, b1 = linear(ks[0], ks[1], n_input, hidden)
    w2, b2 = linear(ks[2], ks[3], hidden, hidden)
    w3, b3 = linear(ks[4], ks[5], hidden, n_output)
    return {"w1": w1, "b1": b1, "w2": w2, "b2": b2, "w3": w3, "b3": b3}


def _reference_forward(x, p):
    h1 = jnp.maximum(x @ p["w1"] + p["b1"], 0.0)
    h2 = jnp.maximum(h1 @ p["w2"] + p["b2"], 0.0)
    return jnp.tanh(h2 @ p["w3"] + p["b3"])


if __name__ == "__main__":
    key = jax.random.PRNGKey(0)
    k_x, k_p = jax.random.split(key)

    # Small demo shapes; batch deliberately NOT a multiple of the tile size so
    # the in-kernel ragged-tail (masked last block) path and a 2-step grid are
    # both exercised.
    batch, n_input, n_output = 20, 32, 8
    x = jax.random.normal(k_x, (batch, n_input), jnp.float32)
    params = init_policy_params(k_p, n_input, n_output)

    out = policy_forward(x, params)          # tb=16 -> grid=(2,), last tile ragged
    out = jax.block_until_ready(out)

    ref = _reference_forward(x, params)
    assert out.shape == (batch, n_output)
    assert jnp.allclose(out, ref, atol=1e-5, rtol=1e-5)

    print("KERNEL_OK")
</pallas_src>

<mosaic_0001>
module attributes {stable_mosaic.version = 11 : i64} {
  func.func @_policy_kernel(%arg0: i32, %arg1: memref<16x32xf32, #tpu.memory_space<vmem>>, %arg2: memref<32x128xf32, #tpu.memory_space<vmem>>, %arg3: memref<1x128xf32, #tpu.memory_space<vmem>>, %arg4: memref<128x128xf32, #tpu.memory_space<vmem>>, %arg5: memref<1x128xf32, #tpu.memory_space<vmem>>, %arg6: memref<128x8xf32, #tpu.memory_space<vmem>>, %arg7: memref<1x8xf32, #tpu.memory_space<vmem>>, %arg8: memref<16x8xf32, #tpu.memory_space<vmem>>) attributes {dimension_semantics = [#tpu.dimension_semantics<parallel>], iteration_bounds = array<i64: 2>, scalar_prefetch = 0 : i64, scratch_operands = 0 : i64, tpu.core_type = #tpu.core_type<tc>, window_params = [{transform_indices = @transform_0, window_bounds = array<i64: 16, 32>}, {pipeline_mode = #tpu.pipeline_mode<synchronous>, transform_indices = @transform_1, window_bounds = array<i64: 32, 128>}, {pipeline_mode = #tpu.pipeline_mode<synchronous>, transform_indices = @transform_2, window_bounds = array<i64: 1, 128>}, {pipeline_mode = #tpu.pipeline_mode<synchronous>, transform_indices = @transform_3, window_bounds = array<i64: 128, 128>}, {pipeline_mode = #tpu.pipeline_mode<synchronous>, transform_indices = @transform_4, window_bounds = array<i64: 1, 128>}, {pipeline_mode = #tpu.pipeline_mode<synchronous>, transform_indices = @transform_5, window_bounds = array<i64: 128, 8>}, {pipeline_mode = #tpu.pipeline_mode<synchronous>, transform_indices = @transform_6, window_bounds = array<i64: 1, 8>}, {transform_indices = @transform_7, window_bounds = array<i64: 16, 8>}]} {
    %c0 = arith.constant 0 : index
    %c0_0 = arith.constant 0 : index
    %0 = vector.load %arg1[%c0, %c0_0] : memref<16x32xf32, #tpu.memory_space<vmem>>, vector<16x32xf32>
    %c0_1 = arith.constant 0 : index
    %c0_2 = arith.constant 0 : index
    %1 = vector.load %arg2[%c0_1, %c0_2] : memref<32x128xf32, #tpu.memory_space<vmem>>, vector<32x128xf32>
    %cst = arith.constant dense<0.000000e+00> : vector<16x128xf32>
    %2 = tpu.matmul %0, %1, %cst {dimension_numbers = #tpu.dot_dimension_numbers<[1], [0], [0], [1], [0, 0, 1, 1], [], []>} : vector<16x32xf32>, vector<32x128xf32>, vector<16x128xf32> -> vector<16x128xf32>
    %c0_3 = arith.constant 0 : index
    %c0_4 = arith.constant 0 : index
    %3 = vector.load %arg3[%c0_3, %c0_4] : memref<1x128xf32, #tpu.memory_space<vmem>>, vector<1x128xf32>
    %4 = vector.broadcast %3 : vector<1x128xf32> to vector<16x128xf32>
    %5 = arith.addf %2, %4 : vector<16x128xf32>
    %cst_5 = arith.constant 0.000000e+00 : f32
    %6 = vector.broadcast %cst_5 : f32 to vector<16x128xf32>
    %7 = arith.maximumf %5, %6 : vector<16x128xf32>
    %c0_6 = arith.constant 0 : index
    %c0_7 = arith.constant 0 : index
    %8 = vector.load %arg4[%c0_6, %c0_7] : memref<128x128xf32, #tpu.memory_space<vmem>>, vector<128x128xf32>
    %cst_8 = arith.constant dense<0.000000e+00> : vector<16x128xf32>
    %9 = tpu.matmul %7, %8, %cst_8 {dimension_numbers = #tpu.dot_dimension_numbers<[1], [0], [0], [1], [0, 0, 1, 1], [], []>} : vector<16x128xf32>, vector<128x128xf32>, vector<16x128xf32> -> vector<16x128xf32>
    %c0_9 = arith.constant 0 : index
    %c0_10 = arith.constant 0 : index
    %10 = vector.load %arg5[%c0_9, %c0_10] : memref<1x128xf32, #tpu.memory_space<vmem>>, vector<1x128xf32>
    %11 = vector.broadcast %10 : vector<1x128xf32> to vector<16x128xf32>
    %12 = arith.addf %9, %11 : vector<16x128xf32>
    %cst_11 = arith.constant 0.000000e+00 : f32
    %13 = vector.broadcast %cst_11 : f32 to vector<16x128xf32>
    %14 = arith.maximumf %12, %13 : vector<16x128xf32>
    %c0_12 = arith.constant 0 : index
    %c0_13 = arith.constant 0 : index
    %15 = vector.load %arg6[%c0_12, %c0_13] : memref<128x8xf32, #tpu.memory_space<vmem>>, vector<128x8xf32>
    %cst_14 = arith.constant dense<0.000000e+00> : vector<16x8xf32>
    %16 = tpu.matmul %14, %15, %cst_14 {dimension_numbers = #tpu.dot_dimension_numbers<[1], [0], [0], [1], [0, 0, 1, 1], [], []>} : vector<16x128xf32>, vector<128x8xf32>, vector<16x8xf32> -> vector<16x8xf32>
    %c0_15 = arith.constant 0 : index
    %c0_16 = arith.constant 0 : index
    %17 = vector.load %arg7[%c0_15, %c0_16] : memref<1x8xf32, #tpu.memory_space<vmem>>, vector<1x8xf32>
    %18 = vector.broadcast %17 : vector<1x8xf32> to vector<16x8xf32>
    %19 = arith.addf %16, %18 : vector<16x8xf32>
    %20 = math.tanh %19 : vector<16x8xf32>
    %c0_17 = arith.constant 0 : index
    %c0_18 = arith.constant 0 : index
    %21 = vector.load %arg8[%c0_17, %c0_18] : memref<16x8xf32, #tpu.memory_space<vmem>>, vector<16x8xf32>
    tpu.vector_store %arg8[%c0_17, %c0_18], %20 {strides = array<i32>} : memref<16x8xf32, #tpu.memory_space<vmem>>, vector<16x8xf32>,
    return
  }
  func.func @transform_0(%arg0: i32) -> (i32, i32) {
    %c0_i32 = arith.constant 0 : i32
    %c0_i32_0 = arith.constant 0 : i32
    return %arg0, %c0_i32 : i32, i32
  }
  func.func @transform_1(%arg0: i32) -> (i32, i32) {
    %c0_i32 = arith.constant 0 : i32
    %c0_i32_0 = arith.constant 0 : i32
    %c0_i32_1 = arith.constant 0 : i32
    return %c0_i32, %c0_i32_0 : i32, i32
  }
  func.func @transform_2(%arg0: i32) -> (i32, i32) {
    %c0_i32 = arith.constant 0 : i32
    %c0_i32_0 = arith.constant 0 : i32
    %c0_i32_1 = arith.constant 0 : i32
    return %c0_i32, %c0_i32_0 : i32, i32
  }
  func.func @transform_3(%arg0: i32) -> (i32, i32) {
    %c0_i32 = arith.constant 0 : i32
    %c0_i32_0 = arith.constant 0 : i32
    %c0_i32_1 = arith.constant 0 : i32
    return %c0_i32, %c0_i32_0 : i32, i32
  }
  func.func @transform_4(%arg0: i32) -> (i32, i32) {
    %c0_i32 = arith.constant 0 : i32
    %c0_i32_0 = arith.constant 0 : i32
    %c0_i32_1 = arith.constant 0 : i32
    return %c0_i32, %c0_i32_0 : i32, i32
  }
  func.func @transform_5(%arg0: i32) -> (i32, i32) {
    %c0_i32 = arith.constant 0 : i32
    %c0_i32_0 = arith.constant 0 : i32
    %c0_i32_1 = arith.constant 0 : i32
    return %c0_i32, %c0_i32_0 : i32, i32
  }
  func.func @transform_6(%arg0: i32) -> (i32, i32) {
    %c0_i32 = arith.constant 0 : i32
    %c0_i32_0 = arith.constant 0 : i32
    %c0_i32_1 = arith.constant 0 : i32
    return %c0_i32, %c0_i32_0 : i32, i32
  }
  func.func @transform_7(%arg0: i32) -> (i32, i32) {
    %c0_i32 = arith.constant 0 : i32
    %c0_i32_0 = arith.constant 0 : i32
    return %arg0, %c0_i32 : i32, i32
  }
}

</mosaic_0001>

<llo_original>
// kernel: tpu_custom_call.1
$region0: #{tpu_custom_call.1}
  #allocation0 [shape = 'u32[]', space=smem, size = 0x4, offset = 0x4, fixed_abs, tag = 'smem constant byte address 0x4 - core index']
  #allocation1 [shape = 'u32[144,128]{1,0:T(1,128)}', space=vmem, size = 0x12000, scoped, tag = 'internal scratch']
  %s0 = inlined_call_operand.hbm [shape: f32[20,32], index: 0, kind: input, shape index: {}]
  %s1 = inlined_call_operand.hbm [shape: f32[32,128], index: 1, kind: input, shape index: {}]
  %s2 = inlined_call_operand.vmem [shape: f32[1,128], index: 2, kind: input, shape index: {}]
  %s3 = inlined_call_operand.vmem [shape: f32[128,128], index: 3, kind: input, shape index: {}]
  %s4 = inlined_call_operand.vmem [shape: f32[1,128], index: 4, kind: input, shape index: {}]
  %s5 = inlined_call_operand.vmem [shape: f32[128,8], index: 5, kind: input, shape index: {}]
  %s6 = inlined_call_operand.vmem [shape: f32[1,8], index: 6, kind: input, shape index: {}]
  %s7 = inlined_call_operand.vmem [shape: f32[20,8], index: 7, kind: output, shape index: {}]
  %s8 = sld [smem:[#allocation0]]
  $region117: #{tpu_custom_call.1} parent=0
    _
  %s10 = ssub.s32 1, %s8
  %s11 = scalar_select 0, %s10, %s8
  $region1: #{tpu_custom_call.1} parent=0
    #allocation2 [shape = 'u8[16384]{0}', space=vmem, size = 0x4000, scoped, tag = 'input window, operand 0']
    #allocation3 [shape = 's32[2]{0}', space=sflag, size = 0x8, scoped, tag = 'scoped memory for tpu_custom_call.1']
    #allocation4 [shape = 'u8[16384]{0}', space=vmem, size = 0x4000, scoped, tag = 'input window, operand 1, single buffered']
    #allocation5 [shape = 's32[1]{0}', space=sflag, size = 0x4, scoped, tag = 'scoped memory for tpu_custom_call.1']
    #allocation6 [shape = 'u8[16384]{0}', space=vmem, size = 0x4000, scoped, tag = 'output window, operand 0']
    %12 = vsyncpa [#allocation3], 0
    %s13 = scalar_lea.sflag [#allocation3], 1
    %14 = vsyncpa %s13, 0
    %15 = vsyncpa [#allocation5], 0
    loop: start=0, step=1, limit=4
    $region2: #{tpu_custom_call.1} parent=1 // loop_pre_header
      _
    $region3: #{tpu_custom_call.1} parent=1 // loop_header
      %s17 = sphi 0, %s21
      %p18 = scmp.ge.s32.totalorder %s17, 4
      %s27 = sphi 0, %s29
      %s30 = sphi 0, %s27
      %s31 = sphi 0, %s30
      %s47 = sphi 0, %s31
      %s51 = sphi 0, %s51
      %s53 = sphi 0, %s51
      %s54 = sphi 0, %s53
      %s68 = sphi 0, %s54
      %s72 = sphi 0, %s72
      %s74 = sphi 0, %s72
      %s75 = sphi 0, %s74
      %s89 = sphi 0, %s75
      %s93 = sphi 0, %s93
      %s95 = sphi 0, %s93
      %s96 = sphi 0, %s95
      %s110 = sphi 0, %s96
      %s114 = sphi 0, %s114
      %s116 = sphi 0, %s114
      %s117 = sphi 0, %s116
      %s131 = sphi 0, %s117
      %s135 = sphi 0, %s135
      %s137 = sphi 0, %s135
      %s138 = sphi 0, %s137
      %s152 = sphi 0, %s138
      %s156 = sphi 0, %s156
      %s158 = sphi 0, %s156
      %s159 = sphi 0, %s158
      %s173 = sphi 0, %s159
      %s179 = sphi 0, %s181
      %s182 = sphi 0, %s179
      %s183 = sphi 0, %s182
      %s199 = sphi 0, %s183
    $region4: #{tpu_custom_call.1} parent=1 // loop_header_branch
      %20 = sbr.rel (%p18) target = $region8
    $region5: #{tpu_custom_call.1} parent=1 // loop_body
      %s22 = ssub.s32 %s17, 1
      %s23 = ssub.s32 %s17, 2
      %s24 = sadd.s32 %s17, 1
      %s25 = ssub.s32 %s17, %s24
      %p26 = scmp.eq.s32.totalorder %s25, 0
      %s28 = sadd.s32 %s27, 1
      %s29 = scalar_select %p26, %s27, %s28
      %p32 = pneg %p26
      %p33 = scmp.eq.s32.totalorder %s17, 1
      %p34 = por %p32, %p33
      %p35 = scmp.ne.s32.totalorder %s27, %s30
      %p36 = scmp.eq.s32.totalorder %s17, 0
      %p37 = por %p35, %p36
      %p38 = scmp.ne.s32.totalorder %s27, %s30
      %p39 = scmp.eq.s32.totalorder %s22, 1
      %p40 = por %p38, %p39
      %p41 = scmp.ne.s32.totalorder %s30, %s31
      %p42 = scmp.eq.s32.totalorder %s22, 0
      %p43 = por %p41, %p42
      %p44 = scmp.ne.s32.totalorder %s30, %s31
      %p45 = scmp.eq.s32.totalorder %s23, 1
      %p46 = por %p44, %p45
      %p48 = scmp.ne.s32.totalorder %s31, %s47
      %p49 = scmp.eq.s32.totalorder %s23, 0
      %p50 = por %p48, %p49
      %s52 = sadd.s32 %s51, 1
      %p55 = scmp.eq.s32.totalorder %s17, 1
      %p56 = scmp.ne.s32.totalorder %s51, %s53
      %p57 = scmp.eq.s32.totalorder %s17, 0
      %p58 = por %p56, %p57
      %p59 = scmp.ne.s32.totalorder %s51, %s53
      %p60 = scmp.eq.s32.totalorder %s22, 1
      %p61 = por %p59, %p60
      %p62 = scmp.ne.s32.totalorder %s53, %s54
      %p63 = scmp.eq.s32.totalorder %s22, 0
      %p64 = por %p62, %p63
      %p65 = scmp.ne.s32.totalorder %s53, %s54
      %p66 = scmp.eq.s32.totalorder %s23, 1
      %p67 = por %p65, %p66
      %p69 = scmp.ne.s32.totalorder %s54, %s68
      %p70 = scmp.eq.s32.totalorder %s23, 0
      %p71 = por %p69, %p70
      %s73 = sadd.s32 %s72, 1
      %p76 = scmp.eq.s32.totalorder %s17, 1
      %p77 = scmp.ne.s32.totalorder %s72, %s74
      %p78 = scmp.eq.s32.totalorder %s17, 0
      %p79 = por %p77, %p78
      %p80 = scmp.ne.s32.totalorder %s72, %s74
      %p81 = scmp.eq.s32.totalorder %s22, 1
      %p82 = por %p80, %p81
      %p83 = scmp.ne.s32.totalorder %s74, %s75
      %p84 = scmp.eq.s32.totalorder %s22, 0
      %p85 = por %p83, %p84
      %p86 = scmp.ne.s32.totalorder %s74, %s75
      %p87 = scmp.eq.s32.totalorder %s23, 1
      %p88 = por %p86, %p87
      %p90 = scmp.ne.s32.totalorder %s75, %s89
      %p91 = scmp.eq.s32.totalorder %s23, 0
      %p92 = por %p90, %p91
      %s94 = sadd.s32 %s93, 1
      %p97 = scmp.eq.s32.totalorder %s17, 1
      %p98 = scmp.ne.s32.totalorder %s93, %s95
      %p99 = scmp.eq.s32.totalorder %s17, 0
      %p100 = por %p98, %p99
      %p101 = scmp.ne.s32.totalorder %s93, %s95
      %p102 = scmp.eq.s32.totalorder %s22, 1
      %p103 = por %p101, %p102
      %p104 = scmp.ne.s32.totalorder %s95, %s96
      %p105 = scmp.eq.s32.totalorder %s22, 0
      %p106 = por %p104, %p105
      %p107 = scmp.ne.s32.totalorder %s95, %s96
      %p108 = scmp.eq.s32.totalorder %s23, 1
      %p109 = por %p107, %p108
      %p111 = scmp.ne.s32.totalorder %s96, %s110
      %p112 = scmp.eq.s32.totalorder %s23, 0
      %p113 = por %p111, %p112
      %s115 = sadd.s32 %s114, 1
      %p118 = scmp.eq.s32.totalorder %s17, 1
      %p119 = scmp.ne.s32.totalorder %s114, %s116
      %p120 = scmp.eq.s32.totalorder %s17, 0
      %p121 = por %p119, %p120
      %p122 = scmp.ne.s32.totalorder %s114, %s116
      %p123 = scmp.eq.s32.totalorder %s22, 1
      %p124 = por %p122, %p123
      %p125 = scmp.ne.s32.totalorder %s116, %s117
      %p126 = scmp.eq.s32.totalorder %s22, 0
      %p127 = por %p125, %p126
      %p128 = scmp.ne.s32.totalorder %s116, %s117
      %p129 = scmp.eq.s32.totalorder %s23, 1
      %p130 = por %p128, %p129
      %p132 = scmp.ne.s32.totalorder %s117, %s131
      %p133 = scmp.eq.s32.totalorder %s23, 0
      %p134 = por %p132, %p133
      %s136 = sadd.s32 %s135, 1
      %p139 = scmp.eq.s32.totalorder %s17, 1
      %p140 = scmp.ne.s32.totalorder %s135, %s137
      %p141 = scmp.eq.s32.totalorder %s17, 0
      %p142 = por %p140, %p141
      %p143 = scmp.ne.s32.totalorder %s135, %s137
      %p144 = scmp.eq.s32.totalorder %s22, 1
      %p145 = por %p143, %p144
      %p146 = scmp.ne.s32.totalorder %s137, %s138
      %p147 = scmp.eq.s32.totalorder %s22, 0
      %p148 = por %p146, %p147
      %p149 = scmp.ne.s32.totalorder %s137, %s138
      %p150 = scmp.eq.s32.totalorder %s23, 1
      %p151 = por %p149, %p150
      %p153 = scmp.ne.s32.totalorder %s138, %s152
      %p154 = scmp.eq.s32.totalorder %s23, 0
      %p155 = por %p153, %p154
      %s157 = sadd.s32 %s156, 1
      %p160 = scmp.eq.s32.totalorder %s17, 1
      %p161 = scmp.ne.s32.totalorder %s156, %s158
      %p162 = scmp.eq.s32.totalorder %s17, 0
      %p163 = por %p161, %p162
      %p164 = scmp.ne.s32.totalorder %s156, %s158
      %p165 = scmp.eq.s32.totalorder %s22, 1
      %p166 = por %p164, %p165
      %p167 = scmp.ne.s32.totalorder %s158, %s159
      %p168 = scmp.eq.s32.totalorder %s22, 0
      %p169 = por %p167, %p168
      %p170 = scmp.ne.s32.totalorder %s158, %s159
      %p171 = scmp.eq.s32.totalorder %s23, 1
      %p172 = por %p170, %p171
      %p174 = scmp.ne.s32.totalorder %s159, %s173
      %p175 = scmp.eq.s32.totalorder %s23, 0
      %p176 = por %p174, %p175
      %s177 = ssub.s32 %s17, %s24
      %p178 = scmp.eq.s32.totalorder %s177, 0
      %s180 = sadd.s32 %s179, 1
      %s181 = scalar_select %p178, %s179, %s180
      %p184 = pneg %p178
      %p185 = scmp.eq.s32.totalorder %s17, 1
      %p186 = por %p184, %p185
      %p187 = scmp.ne.s32.totalorder %s179, %s182
      %p188 = scmp.eq.s32.totalorder %s17, 0
      %p189 = por %p187, %p188
      %p190 = scmp.ne.s32.totalorder %s179, %s182
      %p191 = scmp.eq.s32.totalorder %s22, 1
      %p192 = por %p190, %p191
      %p193 = scmp.ne.s32.totalorder %s182, %s183
      %p194 = scmp.eq.s32.totalorder %s22, 0
      %p195 = por %p193, %p194
      %p196 = scmp.ne.s32.totalorder %s182, %s183
      %p197 = scmp.eq.s32.totalorder %s23, 1
      %p198 = por %p196, %p197
      %p200 = scmp.ne.s32.totalorder %s183, %s199
      %p201 = scmp.eq.s32.totalorder %s23, 0
      %p202 = por %p200, %p201
      %p203 = scmp.le.s32.totalorder 1, %s17
      %p204 = scmp.lt.s32.totalorder %s17, 3
      %p205 = pnand %p203, %p204
      %p206 = pneg %p205
      // Predicated region
      $region9: #{tpu_custom_call.1} parent=5 // pred_check
        _
      $region10: #{tpu_custom_call.1} parent=5 // pred_check_branch
        %208 = sbr.rel (%p205) target = $region12
      $region11: #{tpu_custom_call.1} parent=5 // pred_region
        %s209 = ssub.s32 %s17, 1
        // Predicated region
        $region13: #{tpu_custom_call.1} parent=11 // pred_check
          %p210 = pneg %p64
        $region14: #{tpu_custom_call.1} parent=11 // pred_check_branch
          %212 = sbr.rel (%p210) target = $region16
        $region15: #{tpu_custom_call.1} parent=11 // pred_region
          %s214 = ssub.s32 512, 512
          %215 = vsyncadd [#allocation5], %s214
          %s216 = sshll.u32 [#allocation4], 4
          %s217 = int_to_ptr.vmem [resolvable:$true] %s216
          %222 = dma.hbm_to_vmem [thread:$0]  %s1, 512, %s217, [#allocation5], 128, 128, 8
        $region16: #{tpu_custom_call.1} parent=11 // pred_fallthru
          _
        // Predicated region
        $region17: #{tpu_custom_call.1} parent=11 // pred_check
          %p223 = pneg %p85
        $region18: #{tpu_custom_call.1} parent=11 // pred_check_branch
          %225 = sbr.rel (%p223) target = $region20
        $region19: #{tpu_custom_call.1} parent=11 // pred_region
          _
        $region20: #{tpu_custom_call.1} parent=11 // pred_fallthru
          _
        // Predicated region
        $region21: #{tpu_custom_call.1} parent=11 // pred_check
          %p226 = pneg %p106
        $region22: #{tpu_custom_call.1} parent=11 // pred_check_branch
          %228 = sbr.rel (%p226) target = $region24
        $region23: #{tpu_custom_call.1} parent=11 // pred_region
          _
        $region24: #{tpu_custom_call.1} parent=11 // pred_fallthru
          _
        // Predicated region
        $region25: #{tpu_custom_call.1} parent=11 // pred_check
          %p229 = pneg %p127
        $region26: #{tpu_custom_call.1} parent=11 // pred_check_branch
          %231 = sbr.rel (%p229) target = $region28
        $region27: #{tpu_custom_call.1} parent=11 // pred_region
          _
        $region28: #{tpu_custom_call.1} parent=11 // pred_fallthru
          _
        // Predicated region
        $region29: #{tpu_custom_call.1} parent=11 // pred_check
          %p232 = pneg %p148
        $region30: #{tpu_custom_call.1} parent=11 // pred_check_branch
          %234 = sbr.rel (%p232) target = $region32
        $region31: #{tpu_custom_call.1} parent=11 // pred_region
          _
        $region32: #{tpu_custom_call.1} parent=11 // pred_fallthru
          _
        // Predicated region
        $region33: #{tpu_custom_call.1} parent=11 // pred_check
          %p235 = pneg %p169
        $region34: #{tpu_custom_call.1} parent=11 // pred_check_branch
          %237 = sbr.rel (%p235) target = $region36
        $region35: #{tpu_custom_call.1} parent=11 // pred_region
          _
        $region36: #{tpu_custom_call.1} parent=11 // pred_fallthru
          _
      $region12: #{tpu_custom_call.1} parent=5 // pred_fallthru
        _
      %p238 = scmp.lt.s32.totalorder %s17, 2
      // Predicated region
      $region37: #{tpu_custom_call.1} parent=5 // pred_check
        %p239 = pneg %p238
      $region38: #{tpu_custom_call.1} parent=5 // pred_check_branch
        %241 = sbr.rel (%p239) target = $region40
      $region39: #{tpu_custom_call.1} parent=5 // pred_region
        // Predicated region
        $region41: #{tpu_custom_call.1} parent=39 // pred_check
          %p242 = pneg %p37
        $region42: #{tpu_custom_call.1} parent=39 // pred_check_branch
          %244 = sbr.rel (%p242) target = $region44
        $region43: #{tpu_custom_call.1} parent=39 // pred_region
          %s245 = sand.u32 %s27, 1
          %s246 = scalar_lea.sflag [#allocation3], %s245
          %s247 = sand.u32 %s27, 1
          %s248 = smul.addr %s247, 16
          %s249 = scalar_lea.vmem [#allocation2], %s248
          %s250 = smul.u32 2, %s17
          %s251 = ssub.s32 3, %s250
          %p252 = scmp.lt.s32.totalorder %s251, 2
          %s253 = scalar_select %p252, %s251, 2
          %s254 = smul.u32 128, %s253
          %s256 = ssub.s32 256, %s254
          %257 = vsyncadd %s246, %s256
          %p258 = scmp.ne.s32.totalorder 0, %s254
          %s259 = smul.addr %s250, 128
          %s260 = scalar_lea.hbm %s0, %s259
          %s261 = smul.u32 8, %s253
          %s262 = sshll.u32 %s249, 4
          %s263 = int_to_ptr.vmem [resolvable:$true] %s262
          %s264 = sshll.u32 %s261, 4
          %268 = dma.hbm_to_vmem [thread:$0]  (%p258), %s260, %s264, %s263, %s246, 128, 128, 8
        $region44: #{tpu_custom_call.1} parent=39 // pred_fallthru
          _
      $region40: #{tpu_custom_call.1} parent=5 // pred_fallthru
        _
      %p269 = scmp.le.s32.totalorder 1, %s17
      %p270 = scmp.lt.s32.totalorder %s17, 3
      %p271 = pnand %p269, %p270
      %p272 = pneg %p271
      // Predicated region
      $region45: #{tpu_custom_call.1} parent=5 // pred_check
        _
      $region46: #{tpu_custom_call.1} parent=5 // pred_check_branch
        %274 = sbr.rel (%p271) target = $region48
      $region47: #{tpu_custom_call.1} parent=5 // pred_region
        %s275 = ssub.s32 %s17, 1
        %s276 = sand.u32 %s30, 1
        %s277 = scalar_lea.sflag [#allocation3], %s276
        %s278 = sand.u32 %s30, 1
        %s279 = smul.addr %s278, 16
        %s280 = scalar_lea.vmem [#allocation2], %s279
        // Predicated region
        $region49: #{tpu_custom_call.1} parent=47 // pred_check
          %p281 = pneg %p43
        $region50: #{tpu_custom_call.1} parent=47 // pred_check_branch
          %283 = sbr.rel (%p281) target = $region52
        $region51: #{tpu_custom_call.1} parent=47 // pred_region
          %284 = dma.done %s277, 256
        $region52: #{tpu_custom_call.1} parent=47 // pred_fallthru
          _
        // Predicated region
        $region53: #{tpu_custom_call.1} parent=47 // pred_check
          %p285 = pneg %p64
        $region54: #{tpu_custom_call.1} parent=47 // pred_check_branch
          %287 = sbr.rel (%p285) target = $region56
        $region55: #{tpu_custom_call.1} parent=47 // pred_region
          %288 = dma.done [#allocation5], 512
        $region56: #{tpu_custom_call.1} parent=47 // pred_fallthru
          _
        %s289 = sand.u32 %s30, 1
        %s290 = scalar_lea.sflag [#allocation3], %s289
        %s291 = sand.u32 %s30, 1
        %s292 = smul.addr %s291, 16
        %s293 = scalar_lea.vmem [#allocation2], %s292
        %p294 = pneg %p43
        %p295 = pneg %p40
        %p296 = pneg %p64
        %p297 = pneg %p61
        %p298 = pneg %p85
        %p299 = pneg %p82
        %p300 = pneg %p106
        %p301 = pneg %p103
        %p302 = pneg %p127
        %p303 = pneg %p124
        %p304 = pneg %p148
        %p305 = pneg %p145
        %p306 = pneg %p169
        %p307 = pneg %p166
        %p308 = pneg %p195
        %p309 = pneg %p192
        %s310 = sand.u32 %s182, 1
        %s311 = sand.u32 %s182, 1
        %s312 = smul.addr %s311, 16
        %s313 = scalar_lea.vmem [#allocation6], %s312
        %s314 = smul.u32 2, %s22
        %s315 = ssub.s32 3, %s314
        %p316 = scmp.lt.s32.totalorder %s315, 2
        %s317 = scalar_select %p316, %s315, 2
        %s318 = smul.u32 128, %s317
        %s319 = smul.u32 2, %s22
        %s320 = ssub.s32 3, %s319
        %p321 = scmp.lt.s32.totalorder %s320, 2
        %s322 = scalar_select %p321, %s320, 2
        %s323 = smul.u32 128, %s322
        %v324 = vld [vmem:[%s280] sm:$0xff]
        %v325 = vld [vmem:[%s280 + $0x8] sm:$0xff]
        %v326 = vld [vmem:[#allocation4] sm:$0xff]
        %v327 = vld [vmem:[#allocation4 + $0x8] sm:$0xff]
        %v328 = vld [vmem:[#allocation4 + $0x10] sm:$0xff]
        %v329 = vld [vmem:[#allocation4 + $0x18] sm:$0xff]
        %v330 = vld [vmem:[%s2] sm:$0x1]
        %v332 = vlaneseq
        %v333 = vshrl.u32 %v332, 7
        %v334 = vsub.s32 0, %v333
        %v335 = vrot.slane %v330, %v334
        %vm337 = vcmask 261120
        %v339 = vsel %vm337, %v324, 0
        %v342 = vsel %vm337, %v325, 0
        %344 = vmatprep.subr.mxu0 0.0
        %345 = vmatpush1.msra.mxu0 %v326
        %346 = vmatprep.subr.mxu0 0.0
        %347 = vmatpush1.msra.mxu0 %v327
        %348 = vmatprep.subr.mxu0 0.0
        %349 = vmatpush1.msra.mxu0 %v328
        %350 = vmatprep.subr.mxu0 0.0
        %351 = vmatpush1.msra.mxu0 %v329
        %352 = vmatprep.subr.mxu0 0.0
        %353 = vmatpush1.msra.mxu0 0.0
        %354 = vmatprep.subr.mxu0 0.0
        %355 = vmatpush1.msra.mxu0 0.0
        %356 = vmatprep.subr.mxu0 0.0
        %357 = vmatpush1.msra.mxu0 0.0
        %358 = vmatprep.subr.mxu0 0.0
        %359 = vmatpush1.msra.mxu0 0.0
        %360 = vmatprep.subr.mxu0 0.0
        %361 = vmatpush1.msra.mxu0 0.0
        %362 = vmatprep.subr.mxu0 0.0
        %363 = vmatpush1.msra.mxu0 0.0
        %364 = vmatprep.subr.mxu0 0.0
        %365 = vmatpush1.msra.mxu0 0.0
        %366 = vmatprep.subr.mxu0 0.0
        %367 = vmatpush1.msra.mxu0 0.0
        %368 = vmatprep.subr.mxu0 0.0
        %369 = vmatpush1.msra.mxu0 0.0
        %370 = vmatprep.subr.mxu0 0.0
        %371 = vmatpush1.msra.mxu0 0.0
        %372 = vmatprep.subr.mxu0 0.0
        %373 = vmatpush1.msra.mxu0 0.0
        %374 = vmatprep.subr.mxu0 0.0
        %375 = vmatpush1.msra.mxu0 0.0
        %376 = vmatprep.subr.mxu0 0.0
        %377 = vmatpush1.msra.mxu0 0.0
        %378 = vmatprep.subr.mxu0 0.0
        %379 = vmatpush1.msra.mxu0 0.0
        %380 = vmatprep.subr.mxu0 0.0
        %381 = vmatpush1.msra.mxu0 0.0
        %382 = vmatprep.subr.mxu0 0.0
        %383 = vmatpush1.msra.mxu0 0.0
        %384 = vmatprep.subr.mxu0 0.0
        %385 = vmatpush1.msra.mxu0 0.0
        %386 = vmatprep.subr.mxu0 0.0
        %387 = vmatpush1.msra.mxu0 0.0
        %388 = vmatprep.subr.mxu0 0.0
        %389 = vmatpush1.msra.mxu0 0.0
        %390 = vmatprep.subr.mxu0 0.0
        %391 = vmatpush1.msra.mxu0 0.0
        %392 = vmatprep.subr.mxu0 0.0
        %393 = vmatpush1.msra.mxu0 0.0
        %394 = vmatprep.subr.mxu0 0.0
        %395 = vmatpush1.msra.mxu0 0.0
        %396 = vmatprep.subr.mxu0 0.0
        %397 = vmatpush1.msra.mxu0 0.0
        %398 = vmatprep.subr.mxu0 0.0
        %399 = vmatpush1.msra.mxu0 0.0
        %400 = vmatprep.subr.mxu0 0.0
        %401 = vmatpush1.msra.mxu0 0.0
        %402 = vmatprep.subr.mxu0 0.0
        %403 = vmatpush1.msra.mxu0 0.0
        %404 = vmatprep.subr.mxu0 0.0
        %405 = vmatpush1.msra.mxu0 0.0
        %406 = vmatprep.subr.mxu0 0.0
        %407 = vmatpush1.msra.mxu0 0.0
        %408 = vmatprep.mubr.f32.mxu0 0.0
        %409 = vmatmul.mubr.f32.gmra.mrb[0].mxu0 %v339
        %v410 = vpop.f32.mrb[0].mxu0
        %v411 = vadd.f32 %v335, %v410
        %v412 = vpop.f32.mrb[0].mxu0
        %413 = vmatprep.mubr.f32.mxu0 0.0
        %414 = vmatmul.mubr.f32.gmra.mrb[0].mxu0 %v342
        %v415 = vpop.f32.mrb[0].mxu0
        %v416 = vadd.f32 %v335, %v415
        %v417 = vpop.f32.mrb[0].mxu0
        %418 = vdwg.mxu0
        %v419 = vmax.f32 %v411, 0.0
        %v420 = vmax.f32 %v416, 0.0
        %v421 = vld [vmem:[%s3] sm:$0xff]
        %v422 = vld [vmem:[%s3 + $0x8] sm:$0xff]
        %v423 = vld [vmem:[%s3 + $0x10] sm:$0xff]
        %v424 = vld [vmem:[%s3 + $0x18] sm:$0xff]
        %v425 = vld [vmem:[%s3 + $0x20] sm:$0xff]
        %v426 = vld [vmem:[%s3 + $0x28] sm:$0xff]
        %v427 = vld [vmem:[%s3 + $0x30] sm:$0xff]
        %v428 = vld [vmem:[%s3 + $0x38] sm:$0xff]
        %v429 = vld [vmem:[%s3 + $0x40] sm:$0xff]
        %v430 = vld [vmem:[%s3 + $0x48] sm:$0xff]
        %v431 = vld [vmem:[%s3 + $0x50] sm:$0xff]
        %v432 = vld [vmem:[%s3 + $0x58] sm:$0xff]
        %v433 = vld [vmem:[%s3 + $0x60] sm:$0xff]
        %v434 = vld [vmem:[%s3 + $0x68] sm:$0xff]
        %v435 = vld [vmem:[%s3 + $0x70] sm:$0xff]
        %v436 = vld [vmem:[%s3 + $0x78] sm:$0xff]
        %v437 = vld [vmem:[%s4] sm:$0x1]
        %v439 = vlaneseq
        %v440 = vshrl.u32 %v439, 7
        %v441 = vsub.s32 0, %v440
        %v442 = vrot.slane %v437, %v441
        %444 = vmatprep.subr.mxu0 0.0
        %445 = vmatpush1.msra.mxu0 %v421
        %446 = vmatprep.subr.mxu0 0.0
        %447 = vmatpush1.msra.mxu0 %v422
        %448 = vmatprep.subr.mxu0 0.0
        %449 = vmatpush1.msra.mxu0 %v423
        %450 = vmatprep.subr.mxu0 0.0
        %451 = vmatpush1.msra.mxu0 %v424
        %452 = vmatprep.subr.mxu0 0.0
        %453 = vmatpush1.msra.mxu0 %v425
        %454 = vmatprep.subr.mxu0 0.0
        %455 = vmatpush1.msra.mxu0 %v426
        %456 = vmatprep.subr.mxu0 0.0
        %457 = vmatpush1.msra.mxu0 %v427
        %458 = vmatprep.subr.mxu0 0.0
        %459 = vmatpush1.msra.mxu0 %v428
        %460 = vmatprep.subr.mxu0 0.0
        %461 = vmatpush1.msra.mxu0 %v429
        %462 = vmatprep.subr.mxu0 0.0
        %463 = vmatpush1.msra.mxu0 %v430
        %464 = vmatprep.subr.mxu0 0.0
        %465 = vmatpush1.msra.mxu0 %v431
        %466 = vmatprep.subr.mxu0 0.0
        %467 = vmatpush1.msra.mxu0 %v432
        %468 = vmatprep.subr.mxu0 0.0
        %469 = vmatpush1.msra.mxu0 %v433
        %470 = vmatprep.subr.mxu0 0.0
        %471 = vmatpush1.msra.mxu0 %v434
        %472 = vmatprep.subr.mxu0 0.0
        %473 = vmatpush1.msra.mxu0 %v435
        %474 = vmatprep.subr.mxu0 0.0
        %475 = vmatpush1.msra.mxu0 %v436
        %476 = vmatprep.subr.mxu0 0.0
        %477 = vmatpush1.msra.mxu0 0.0
        %478 = vmatprep.subr.mxu0 0.0
        %479 = vmatpush1.msra.mxu0 0.0
        %480 = vmatprep.subr.mxu0 0.0
        %481 = vmatpush1.msra.mxu0 0.0
        %482 = vmatprep.subr.mxu0 0.0
        %483 = vmatpush1.msra.mxu0 0.0
        %484 = vmatprep.subr.mxu0 0.0
        %485 = vmatpush1.msra.mxu0 0.0
        %486 = vmatprep.subr.mxu0 0.0
        %487 = vmatpush1.msra.mxu0 0.0
        %488 = vmatprep.subr.mxu0 0.0
        %489 = vmatpush1.msra.mxu0 0.0
        %490 = vmatprep.subr.mxu0 0.0
        %491 = vmatpush1.msra.mxu0 0.0
        %492 = vmatprep.subr.mxu0 0.0
        %493 = vmatpush1.msra.mxu0 0.0
        %494 = vmatprep.subr.mxu0 0.0
        %495 = vmatpush1.msra.mxu0 0.0
        %496 = vmatprep.subr.mxu0 0.0
        %497 = vmatpush1.msra.mxu0 0.0
        %498 = vmatprep.subr.mxu0 0.0
        %499 = vmatpush1.msra.mxu0 0.0
        %500 = vmatprep.subr.mxu0 0.0
        %501 = vmatpush1.msra.mxu0 0.0
        %502 = vmatprep.subr.mxu0 0.0
        %503 = vmatpush1.msra.mxu0 0.0
        %504 = vmatprep.subr.mxu0 0.0
        %505 = vmatpush1.msra.mxu0 0.0
        %506 = vmatprep.subr.mxu0 0.0
        %507 = vmatpush1.msra.mxu0 0.0
        %508 = vmatprep.mubr.f32.mxu0 0.0
        %509 = vmatmul.mubr.f32.gmra.mrb[0].mxu0 %v419
        %v510 = vpop.f32.mrb[0].mxu0
        %v511 = vadd.f32 %v442, %v510
        %v512 = vpop.f32.mrb[0].mxu0
        %513 = vmatprep.mubr.f32.mxu0 0.0
        %514 = vmatmul.mubr.f32.gmra.mrb[0].mxu0 %v420
        %v515 = vpop.f32.mrb[0].mxu0
        %v516 = vadd.f32 %v442, %v515
        %v517 = vpop.f32.mrb[0].mxu0
        %518 = vdwg.mxu0
        %v519 = vmax.f32 %v511, 0.0
        %v520 = vmax.f32 %v516, 0.0
        %v521 = vld [vmem:[%s5] sm:$0xff]
        %v522 = vld [vmem:[%s5 + $0x8] sm:$0xff]
        %v523 = vld [vmem:[%s5 + $0x10] sm:$0xff]
        %v524 = vld [vmem:[%s5 + $0x18] sm:$0xff]
        %v525 = vld [vmem:[%s5 + $0x20] sm:$0xff]
        %v526 = vld [vmem:[%s5 + $0x28] sm:$0xff]
        %v527 = vld [vmem:[%s5 + $0x30] sm:$0xff]
        %v528 = vld [vmem:[%s5 + $0x38] sm:$0xff]
        %v529 = vld [vmem:[%s5 + $0x40] sm:$0xff]
        %v530 = vld [vmem:[%s5 + $0x48] sm:$0xff]
        %v531 = vld [vmem:[%s5 + $0x50] sm:$0xff]
        %v532 = vld [vmem:[%s5 + $0x58] sm:$0xff]
        %v533 = vld [vmem:[%s5 + $0x60] sm:$0xff]
        %v534 = vld [vmem:[%s5 + $0x68] sm:$0xff]
        %v535 = vld [vmem:[%s5 + $0x70] sm:$0xff]
        %v536 = vld [vmem:[%s5 + $0x78] sm:$0xff]
        %v537 = vld [vmem:[%s6] sm:$0x1]
        %v539 = vlaneseq
        %v540 = vshrl.u32 %v539, 7
        %v541 = vsub.s32 0, %v540
        %v542 = vrot.slane %v537, %v541
        %544 = vmatprep.subr.mxu0 0.0
        %545 = vmatpush1.msra.mxu0 %v521
        %546 = vmatprep.subr.mxu0 0.0
        %547 = vmatpush1.msra.mxu0 %v522
        %548 = vmatprep.subr.mxu0 0.0
        %549 = vmatpush1.msra.mxu0 %v523
        %550 = vmatprep.subr.mxu0 0.0
        %551 = vmatpush1.msra.mxu0 %v524
        %552 = vmatprep.subr.mxu0 0.0
        %553 = vmatpush1.msra.mxu0 %v525
        %554 = vmatprep.subr.mxu0 0.0
        %555 = vmatpush1.msra.mxu0 %v526
        %556 = vmatprep.subr.mxu0 0.0
        %557 = vmatpush1.msra.mxu0 %v527
        %558 = vmatprep.subr.mxu0 0.0
        %559 = vmatpush1.msra.mxu0 %v528
        %560 = vmatprep.subr.mxu0 0.0
        %561 = vmatpush1.msra.mxu0 %v529
        %562 = vmatprep.subr.mxu0 0.0
        %563 = vmatpush1.msra.mxu0 %v530
        %564 = vmatprep.subr.mxu0 0.0
        %565 = vmatpush1.msra.mxu0 %v531
        %566 = vmatprep.subr.mxu0 0.0
        %567 = vmatpush1.msra.mxu0 %v532
        %568 = vmatprep.subr.mxu0 0.0
        %569 = vmatpush1.msra.mxu0 %v533
        %570 = vmatprep.subr.mxu0 0.0
        %571 = vmatpush1.msra.mxu0 %v534
        %572 = vmatprep.subr.mxu0 0.0
        %573 = vmatpush1.msra.mxu0 %v535
        %574 = vmatprep.subr.mxu0 0.0
        %575 = vmatpush1.msra.mxu0 %v536
        %576 = vmatprep.subr.mxu0 0.0
        %577 = vmatpush1.msra.mxu0 0.0
        %578 = vmatprep.subr.mxu0 0.0
        %579 = vmatpush1.msra.mxu0 0.0
        %580 = vmatprep.subr.mxu0 0.0
        %581 = vmatpush1.msra.mxu0 0.0
        %582 = vmatprep.subr.mxu0 0.0
        %583 = vmatpush1.msra.mxu0 0.0
        %584 = vmatprep.subr.mxu0 0.0
        %585 = vmatpush1.msra.mxu0 0.0
        %586 = vmatprep.subr.mxu0 0.0
        %587 = vmatpush1.msra.mxu0 0.0
        %588 = vmatprep.subr.mxu0 0.0
        %589 = vmatpush1.msra.mxu0 0.0
        %590 = vmatprep.subr.mxu0 0.0
        %591 = vmatpush1.msra.mxu0 0.0
        %592 = vmatprep.subr.mxu0 0.0
        %593 = vmatpush1.msra.mxu0 0.0
        %594 = vmatprep.subr.mxu0 0.0
        %595 = vmatpush1.msra.mxu0 0.0
        %596 = vmatprep.subr.mxu0 0.0
        %597 = vmatpush1.msra.mxu0 0.0
        %598 = vmatprep.subr.mxu0 0.0
        %599 = vmatpush1.msra.mxu0 0.0
        %600 = vmatprep.subr.mxu0 0.0
        %601 = vmatpush1.msra.mxu0 0.0
        %602 = vmatprep.subr.mxu0 0.0
        %603 = vmatpush1.msra.mxu0 0.0
        %604 = vmatprep.subr.mxu0 0.0
        %605 = vmatpush1.msra.mxu0 0.0
        %606 = vmatprep.subr.mxu0 0.0
        %607 = vmatpush1.msra.mxu0 0.0
        %608 = vmatprep.mubr.f32.mxu0 0.0
        %609 = vmatmul.mubr.f32.gmra.mrb[0].mxu0 %v519
        %v610 = vpop.f32.mrb[0].mxu0
        %v611 = vadd.f32 %v542, %v610
        %v612 = vpop.f32.mrb[0].mxu0
        %613 = vmatprep.mubr.f32.mxu0 0.0
        %614 = vmatmul.mubr.f32.gmra.mrb[0].mxu0 %v520
        %v615 = vpop.f32.mrb[0].mxu0
        %v616 = vadd.f32 %v542, %v615
        %v617 = vpop.f32.mrb[0].mxu0
        %618 = vdwg.mxu0
        %v619 = vtanh.pop %v611
        %v620 = vtanh.pop %v616
        %vm621 = vcmask 64512
        %622 = vst.msk [vmem:[%s313] sm:$0xff] %vm621, %v619
        %623 = vst.msk [vmem:[%s313 + $0x8] sm:$0xff] %vm621, %v620
        %s624 = sand.u32 %s182, 1
        %s625 = sand.u32 %s182, 1
        %s626 = smul.addr %s625, 16
        %s627 = scalar_lea.vmem [#allocation6], %s626
        // Predicated region
        $region57: #{tpu_custom_call.1} parent=47 // pred_check
          %p628 = pneg %p192
        $region58: #{tpu_custom_call.1} parent=47 // pred_check_branch
          %630 = sbr.rel (%p628) target = $region60
        $region59: #{tpu_custom_call.1} parent=47 // pred_region
          %s631 = smul.u32 2, %s22
          %s632 = ssub.s32 3, %s631
          %p633 = scmp.lt.s32.totalorder %s632, 2
          %s634 = scalar_select %p633, %s632, 2
          %s635 = smul.u32 128, %s634
          %p636 = scmp.ne.s32.totalorder 0, %s635
          %s637 = smul.addr %s631, 8
          %s638 = scalar_lea.vmem %s7, %s637
          // Predicated region
          $region61: #{tpu_custom_call.1} parent=59 // pred_check
            %p639 = pneg %p636
          $region62: #{tpu_custom_call.1} parent=59 // pred_check_branch
            %641 = sbr.rel (%p639) target = $region64
          $region63: #{tpu_custom_call.1} parent=59 // pred_region
            // Predicated region
            $region65: #{tpu_custom_call.1} parent=63 // pred_check
              _
            $region66: #{tpu_custom_call.1} parent=63 // pred_check_branch
              %643 = sbr.rel (0) target = $region68
            $region67: #{tpu_custom_call.1} parent=63 // pred_region
              // Predicated region
              $region87: #{tpu_custom_call.1} parent=67 // pred_check
                _
              $region88: #{tpu_custom_call.1} parent=67 // pred_check_branch
                %694 = sbr.rel (0) target = $region90
              $region89: #{tpu_custom_call.1} parent=67 // pred_region
                %s695 = sshrl.u32 %s634, 1
                // While loop
                $region91: #{tpu_custom_call.1} parent=89 // loop_pre_header
                  _
                $region92: #{tpu_custom_call.1} parent=89 // loop_header
                  %s697 = sphi 0, %s699
                  %p698 = scmp.ge.s32.totalorder %s697, %s695
                  %s702 = sphi 0, %s711
                  %s703 = sphi %s627, %s714
                  %s704 = sphi %s638, %s715
                $region93: #{tpu_custom_call.1} parent=89 // loop_header_branch
                  %701 = sbr.rel (%p698) target = $region97
                $region94: #{tpu_custom_call.1} parent=89 // loop_body
                  %v705 = vld [vmem:[%s703] sm:$0xff]
                  %706 = vst [vmem:[%s704] sm:$0xff] %v705
                  %v707 = vld [vmem:[%s703 + $0x8] sm:$0xff]
                  %708 = vst [vmem:[%s704 + $0x8] sm:$0xff] %v707
                  %s709 = sadd.s32 1, %s702
                  %p710 = scmp.ge.s32.totalorder %s709, %s695
                  %s711 = scalar_select %p710, 0, %s709
                  %s712 = smul.u32 %s711, 16
                  %s713 = smul.u32 %s711, 16
                  %s714 = scalar_lea.vmem %s627, %s712 [#allocation6]
                  %s715 = scalar_lea.vmem %s638, %s713
                $region95: #{tpu_custom_call.1} parent=89 // loop_footer
                  %s699 = sadd.s32 %s697, 1
                $region96: #{tpu_custom_call.1} parent=89 // loop_footer_branch
                  %696 = sbr.rel target = $region92
                $region97: #{tpu_custom_call.1} parent=89 // loop_exit
                  _
                %s716 = sshrl.u32 %s634, 1
                %s717 = sand.u32 %s634, 1
                %s718 = smul.u32 %s716, 2
                %s719 = smul.u32 8, %s718
                %s720 = scalar_lea.vmem %s627, %s719 [#allocation6]
                %s721 = smul.u32 8, %s718
                %s722 = scalar_lea.vmem %s638, %s721
                // While loop
                $region98: #{tpu_custom_call.1} parent=89 // loop_pre_header
                  _
                $region99: #{tpu_custom_call.1} parent=89 // loop_header
                  %s724 = sphi 0, %s726
                  %p725 = scmp.ge.s32.totalorder %s724, %s717
                  %s729 = sphi 0, %s736
                  %s730 = sphi %s720, %s739
                  %s731 = sphi %s722, %s740
                $region100: #{tpu_custom_call.1} parent=89 // loop_header_branch
                  %728 = sbr.rel (%p725) target = $region104
                $region101: #{tpu_custom_call.1} parent=89 // loop_body
                  %v732 = vld [vmem:[%s730] sm:$0xff]
                  %733 = vst [vmem:[%s731] sm:$0xff] %v732
                  %s734 = sadd.s32 1, %s729
                  %p735 = scmp.ge.s32.totalorder %s734, %s717
                  %s736 = scalar_select %p735, 0, %s734
                  %s737 = smul.u32 %s736, 8
                  %s738 = smul.u32 %s736, 8
                  %s739 = scalar_lea.vmem %s720, %s737 [#allocation6]
                  %s740 = scalar_lea.vmem %s722, %s738
                $region102: #{tpu_custom_call.1} parent=89 // loop_footer
                  %s726 = sadd.s32 %s724, 1
                $region103: #{tpu_custom_call.1} parent=89 // loop_footer_branch
                  %723 = sbr.rel target = $region99
                $region104: #{tpu_custom_call.1} parent=89 // loop_exit
                  _
              $region90: #{tpu_custom_call.1} parent=67 // pred_fallthru
                _
              // Predicated region
              $region105: #{tpu_custom_call.1} parent=67 // pred_check
                _
              $region106: #{tpu_custom_call.1} parent=67 // pred_check_branch
                %742 = sbr.rel target = $region108
              $region107: #{tpu_custom_call.1} parent=67 // pred_region
                _
              $region108: #{tpu_custom_call.1} parent=67 // pred_fallthru
                _
            $region68: #{tpu_custom_call.1} parent=63 // pred_fallthru
              _
            // Predicated region
            $region69: #{tpu_custom_call.1} parent=63 // pred_check
              _
            $region70: #{tpu_custom_call.1} parent=63 // pred_check_branch
              %645 = sbr.rel target = $region72
            $region71: #{tpu_custom_call.1} parent=63 // pred_region
              %s647 = sshrl.u32 %s634, 1
              // While loop
              $region73: #{tpu_custom_call.1} parent=71 // loop_pre_header
                _
              $region74: #{tpu_custom_call.1} parent=71 // loop_header
                %s649 = sphi 0, %s651
                %p650 = scmp.ge.s32.totalorder %s649, %s647
                %s654 = sphi 0, %s663
                %s655 = sphi %s627, %s666
                %s656 = sphi %s638, %s667
              $region75: #{tpu_custom_call.1} parent=71 // loop_header_branch
                %653 = sbr.rel (%p650) target = $region79
              $region76: #{tpu_custom_call.1} parent=71 // loop_body
                %v657 = vld [vmem:[%s655] sm:$0xff]
                %658 = vst [vmem:[%s656] sm:$0xff] %v657
                %v659 = vld [vmem:[%s655 + $0x8] sm:$0xff]
                %660 = vst [vmem:[%s656 + $0x8] sm:$0xff] %v659
                %s661 = sadd.s32 1, %s654
                %p662 = scmp.ge.s32.totalorder %s661, %s647
                %s663 = scalar_select %p662, 0, %s661
                %s664 = smul.u32 %s663, 16
                %s665 = smul.u32 %s663, 16
                %s666 = scalar_lea.vmem %s627, %s664 [#allocation6]
                %s667 = scalar_lea.vmem %s638, %s665
              $region77: #{tpu_custom_call.1} parent=71 // loop_footer
                %s651 = sadd.s32 %s649, 1
              $region78: #{tpu_custom_call.1} parent=71 // loop_footer_branch
                %648 = sbr.rel target = $region74
              $region79: #{tpu_custom_call.1} parent=71 // loop_exit
                _
              %s668 = sshrl.u32 %s634, 1
              %s669 = sand.u32 %s634, 1
              %s670 = smul.u32 %s668, 2
              %s671 = smul.u32 8, %s670
              %s672 = scalar_lea.vmem %s627, %s671 [#allocation6]
              %s673 = smul.u32 8, %s670
              %s674 = scalar_lea.vmem %s638, %s673
              // While loop
              $region80: #{tpu_custom_call.1} parent=71 // loop_pre_header
                _
              $region81: #{tpu_custom_call.1} parent=71 // loop_header
                %s676 = sphi 0, %s678
                %p677 = scmp.ge.s32.totalorder %s676, %s669
                %s681 = sphi 0, %s688
                %s682 = sphi %s672, %s691
                %s683 = sphi %s674, %s692
              $region82: #{tpu_custom_call.1} parent=71 // loop_header_branch
                %680 = sbr.rel (%p677) target = $region86
              $region83: #{tpu_custom_call.1} parent=71 // loop_body
                %v684 = vld [vmem:[%s682] sm:$0xff]
                %685 = vst [vmem:[%s683] sm:$0xff] %v684
                %s686 = sadd.s32 1, %s681
                %p687 = scmp.ge.s32.totalorder %s686, %s669
                %s688 = scalar_select %p687, 0, %s686
                %s689 = smul.u32 %s688, 8
                %s690 = smul.u32 %s688, 8
                %s691 = scalar_lea.vmem %s672, %s689 [#allocation6]
                %s692 = scalar_lea.vmem %s674, %s690
              $region84: #{tpu_custom_call.1} parent=71 // loop_footer
                %s678 = sadd.s32 %s676, 1
              $region85: #{tpu_custom_call.1} parent=71 // loop_footer_branch
                %675 = sbr.rel target = $region81
              $region86: #{tpu_custom_call.1} parent=71 // loop_exit
                _
            $region72: #{tpu_custom_call.1} parent=63 // pred_fallthru
              _
          $region64: #{tpu_custom_call.1} parent=59 // pred_fallthru
            _
          %743 = vnop
        $region60: #{tpu_custom_call.1} parent=47 // pred_fallthru
          _
      $region48: #{tpu_custom_call.1} parent=5 // pred_fallthru
        _
      %p744 = scmp.le.s32.totalorder 2, %s17
      // Predicated region
      $region109: #{tpu_custom_call.1} parent=5 // pred_check
        %p745 = pneg %p744
      $region110: #{tpu_custom_call.1} parent=5 // pred_check_branch
        %747 = sbr.rel (%p745) target = $region112
      $region111: #{tpu_custom_call.1} parent=5 // pred_region
        %s748 = ssub.s32 %s17, 2
        // Predicated region
        $region113: #{tpu_custom_call.1} parent=111 // pred_check
          %p749 = pneg %p198
        $region114: #{tpu_custom_call.1} parent=111 // pred_check_branch
          %751 = sbr.rel (%p749) target = $region116
        $region115: #{tpu_custom_call.1} parent=111 // pred_region
          %s752 = sand.u32 %s183, 1
          %s753 = sand.u32 %s183, 1
          %s754 = smul.addr %s753, 16
          %s755 = scalar_lea.vmem [#allocation6], %s754
        $region116: #{tpu_custom_call.1} parent=111 // pred_fallthru
          _
      $region112: #{tpu_custom_call.1} parent=5 // pred_fallthru
        _
    $region6: #{tpu_custom_call.1} parent=1 // loop_footer
      %s21 = sadd.s32 1, %s17
    $region7: #{tpu_custom_call.1} parent=1 // loop_footer_branch
      %16 = sbr.rel target = $region3
    $region8: #{tpu_custom_call.1} parent=1 // loop_exit
      _
    %756 = vsyncpa [#allocation3], 1
    %s757 = scalar_lea.sflag [#allocation3], 1
    %758 = vsyncpa %s757, 1
    %759 = vsyncpa [#allocation5], 1

</llo_original>
